<compile_context>
chip_gen: v5e
topology: v5e:2x2
jax: 0.10.0
libtpu: 0.0.40
codegen_flags: <defaults>
</compile_context>

<pallas_src>
import jax
import jax.numpy as jnp
from jax import lax
from jax.experimental import pallas as pl
from jax.experimental.pallas import tpu as pltpu


# ----------------------------- configuration --------------------------------
MAX_LENGTH = 8
NUM_VOCABS = 16
EMBED_DIM = 32
CON_DIMS = 1            # enthalpy.unsqueeze(1) -> cond_dim == 1
FC_DIMS = (64, 32)      # two (Linear+ReLU) fc layers
LATENT_DIM = 16
BATCH = 2

LV = MAX_LENGTH * NUM_VOCABS          # 128: fused (position, vocab) one-hot width

# --- packed input layout (B, 32): [tokens 0:8 | enthalpy 8 | pad | eps 16:32] -
_C_TOK = 0
_C_ENTH = MAX_LENGTH                   # 8
_C_EPS = 16
IN_COLS = 32

# --- single packed weight slab (rows x 64 lanes), row offsets multiples of 8 --
_R_EMBFC0 = 0                          # (128, 64)  embed folded into fc0
_R_MID = 128                           # (96, 64)   block-diag [fc1 | prior p1]
_R_HEAD = 224                          # (64, 0:32) 0.6*[mu|lv] stacked on 0.4*(p2@[pmu|plv])
_R_BIAS = 288                          # (8, 64)    packed bias / small-vector rows
SLAB_ROWS = 296
# bias rows: 0 fc0_b(64) | 1 [fc1_b|p1_b](64) | 2 head_b(0:32) | 3 p0_w(0:16) | 4 p0_b(0:16)


# ------------------------------ Pallas kernel --------------------------------
def cond_encoder_kernel(in_ref, w_ref, out_ref):
    f32 = jnp.float32
    bt = in_ref.shape[0]

    xin = in_ref[...]                                    # (bt, 32) single load
    x = xin[:, _C_TOK:_C_TOK + MAX_LENGTH]               # (bt, 8) token ids as f32
    c = xin[:, _C_ENTH:_C_ENTH + 1]                      # (bt, 1) condition
    eps = xin[:, _C_EPS:_C_EPS + LATENT_DIM]             # (bt, 16) reparam noise

    bias = w_ref[_R_BIAS:_R_BIAS + 8, :]                 # (8, 64) one load, sliced in-register

    # ---- fused embedding + fc0: build the (position, vocab) one-hot with one
    #      tiny MXU "selection" matmul (xrep[b, l*16+v] = x[b, l]) + one compare.
    pos_sel = (lax.broadcasted_iota(jnp.int32, (MAX_LENGTH, LV), 0)
               == (lax.broadcasted_iota(jnp.int32, (MAX_LENGTH, LV), 1) >> 4)
               ).astype(f32)                             # compile-time constant (8, 128)
    voc = (lax.broadcasted_iota(jnp.int32, (bt, LV), 1)
           & (NUM_VOCABS - 1)).astype(f32)               # compile-time constant (bt, 128)
    xrep = jnp.dot(x, pos_sel, preferred_element_type=f32)          # (bt, 128)
    onehot = (xrep == voc).astype(f32)                              # (bt, 128)

    h0 = jnp.maximum(
        jnp.dot(onehot, w_ref[_R_EMBFC0:_R_EMBFC0 + LV, :],
                preferred_element_type=f32) + bias[0:1, :], 0.0)    # (bt, 64)

    # ---- prior Linear(1, 16) is a broadcast multiply (padded to 32 lanes; the
    #      pad lanes are exactly zero so the fused mid layer ignores them).
    hp0 = jnp.maximum(c * bias[3:4, 0:32] + bias[4:5, 0:32], 0.0)   # (bt, 32)

    # ---- block-diagonal fused [fc1 | prior p1]: (bt, 96) @ (96, 64) -> [h | hp]
    g = jnp.maximum(
        jnp.dot(jnp.concatenate([h0, hp0], axis=1),
                w_ref[_R_MID:_R_MID + 96, :],
                preferred_element_type=f32) + bias[1:2, :], 0.0)    # (bt, 64)

    # ---- fused, pre-scaled head: mixed = 0.6*[mu_x|lv_x] + 0.4*[mu_p|lv_p]
    #      (prior p2 and the 0.6/0.4 mix were folded into the weights at pack time)
    mixed = jnp.dot(g, w_ref[_R_HEAD:_R_HEAD + 64, 0:32],
                    preferred_element_type=f32) + bias[2:3, 0:32]   # (bt, 32)

    mu = mixed[:, 0:LATENT_DIM]
    lv = mixed[:, LATENT_DIM:2 * LATENT_DIM]
    z = eps * jnp.exp(0.5 * lv) + mu                                # (bt, 16)

    # ---- packed output [z | mu | logvar], two slice stores (no concat relayout)
    out_ref[:, 0:LATENT_DIM] = z
    out_ref[:, LATENT_DIM:3 * LATENT_DIM] = mixed


# ------------------------------ wrapper ---------------------------------------
def _round_up(n, m):
    return (n + m - 1) // m * m


def _pick_tile(B):
    # Big tiles minimize per-grid-step overhead (~0.35us/step).  512-row cap
    # keeps the grid >= 2 "parallel" steps once B > 512 so v7x's two TensorCores
    # both get work; single-TC v5e/v6e just see one (or few) large steps.
    return min(_round_up(B, 8), 512)


@jax.jit
def cond_encoder_forward(X, enthalpy, eps, packed):
    """CondEncoder.forward: returns (z, mu, logvar).  eps is the reparam noise
    (torch.randn_like), generated outside so the kernel is deterministic."""
    slab = packed["slab"]
    B = X.shape[0]
    bt = _pick_tile(B)

    # Pack the three per-row inputs into one (B, 32) slab -> a single input DMA.
    packed_in = jnp.concatenate(
        [X.astype(jnp.float32),
         enthalpy[:, None].astype(jnp.float32),
         jnp.zeros((B, _C_EPS - MAX_LENGTH - 1), jnp.float32),
         eps.astype(jnp.float32)], axis=1)                      # (B, 32)

    out = pl.pallas_call(
        cond_encoder_kernel,
        out_shape=jax.ShapeDtypeStruct((B, 3 * LATENT_DIM), jnp.float32),
        grid_spec=pltpu.PrefetchScalarGridSpec(
            num_scalar_prefetch=0,
            grid=(pl.cdiv(B, bt),),                 # partial tail block masked by Pallas
            in_specs=[
                pl.BlockSpec((bt, IN_COLS), lambda i: (i, 0)),        # packed per-row inputs
                pl.BlockSpec((SLAB_ROWS, FC_DIMS[0]), lambda i: (0, 0)),  # merged weight slab
            ],
            out_specs=pl.BlockSpec((bt, 3 * LATENT_DIM), lambda i: (i, 0)),
        ),
        compiler_params=pltpu.CompilerParams(
            dimension_semantics=("parallel",)),
    )(packed_in, slab)

    z = out[:, 0:LATENT_DIM]
    mu = out[:, LATENT_DIM:2 * LATENT_DIM]
    lv = out[:, 2 * LATENT_DIM:3 * LATENT_DIM]
    return z, mu, lv


# --------------------------- parameter handling -------------------------------
def init_params(key):
    """Raw per-layer params; weights stored as (in, out) = PyTorch W.T, biases (1, out)."""
    def dense(key, fan_in, fan_out):
        kw, kb = jax.random.split(key)
        bound = 1.0 / jnp.sqrt(jnp.float32(fan_in))
        w = jax.random.uniform(kw, (fan_in, fan_out), jnp.float32, -bound, bound)
        b = jax.random.uniform(kb, (1, fan_out), jnp.float32, -bound, bound)
        return w, b

    keys = jax.random.split(key, 10)
    p = {}
    p["embed"] = jax.random.normal(keys[0], (NUM_VOCABS, EMBED_DIM), jnp.float32)
    p["fc0_w"], p["fc0_b"] = dense(keys[1], EMBED_DIM * MAX_LENGTH, FC_DIMS[0])
    p["fc1_w"], p["fc1_b"] = dense(keys[2], FC_DIMS[0], FC_DIMS[1])
    p["mu_w"], p["mu_b"] = dense(keys[3], FC_DIMS[-1], LATENT_DIM)
    p["lv_w"], p["lv_b"] = dense(keys[4], FC_DIMS[-1], LATENT_DIM)
    # prior block: 1 -> 16 -> 32 -> 64 -> latent (no ReLU after the 32->64 layer)
    p["p0_w"], p["p0_b"] = dense(keys[5], CON_DIMS, 16)
    p["p1_w"], p["p1_b"] = dense(keys[6], 16, 32)
    p["p2_w"], p["p2_b"] = dense(keys[7], 32, 64)
    p["pmu_w"], p["pmu_b"] = dense(keys[8], 64, LATENT_DIM)
    p["plv_w"], p["plv_b"] = dense(keys[9], 64, LATENT_DIM)
    return p


def pack_params(p):
    """Fold + pack raw params into ONE contiguous (296, 64) VMEM slab (exact algebra)."""
    L, E, V = MAX_LENGTH, EMBED_DIM, NUM_VOCABS
    H0, H1 = FC_DIMS

    # embed folded into fc0: W_comb[l*V+v, :] = embed[v, :] @ fc0_w[l*E:(l+1)*E, :]
    fc0_w3 = p["fc0_w"].reshape(L, E, H0)
    w_emb_fc0 = jnp.einsum("ve,leo->lvo", p["embed"], fc0_w3).reshape(L * V, H0)

    # block-diag mid layer: [h0 (64) | hp0 (32, lanes 16:32 zero)] -> [h (32) | hp (32)]
    w_mid = jnp.zeros((96, H0), jnp.float32)
    w_mid = w_mid.at[0:64, 0:32].set(p["fc1_w"])
    w_mid = w_mid.at[64:80, 32:64].set(p["p1_w"])
    b_mid = jnp.concatenate([p["fc1_b"].reshape(-1), p["p1_b"].reshape(-1)])

    # fused, pre-scaled head: fold prior p2 (no ReLU after it) and the 0.6/0.4 mix
    mulv_w = jnp.concatenate([p["mu_w"], p["lv_w"]], axis=1)              # (32, 32)
    mulv_b = jnp.concatenate([p["mu_b"].reshape(-1), p["lv_b"].reshape(-1)])
    phead_w = jnp.concatenate([p["pmu_w"], p["plv_w"]], axis=1)           # (64, 32)
    phead_b = jnp.concatenate([p["pmu_b"].reshape(-1), p["plv_b"].reshape(-1)])
    ph_w = p["p2_w"] @ phead_w                                            # (32, 32)
    ph_b = p["p2_b"].reshape(-1) @ phead_w + phead_b                      # (32,)
    w_head = jnp.concatenate([0.6 * mulv_w, 0.4 * ph_w], axis=0)          # (64, 32)
    b_head = 0.6 * mulv_b + 0.4 * ph_b

    slab = jnp.zeros((SLAB_ROWS, H0), jnp.float32)
    slab = slab.at[_R_EMBFC0:_R_EMBFC0 + L * V, :].set(w_emb_fc0)
    slab = slab.at[_R_MID:_R_MID + 96, :].set(w_mid)
    slab = slab.at[_R_HEAD:_R_HEAD + 64, 0:32].set(w_head)
    slab = slab.at[_R_BIAS + 0, :].set(p["fc0_b"].reshape(-1))
    slab = slab.at[_R_BIAS + 1, :].set(b_mid)
    slab = slab.at[_R_BIAS + 2, 0:32].set(b_head)
    slab = slab.at[_R_BIAS + 3, 0:16].set(p["p0_w"].reshape(-1))          # Linear(1,16) weight
    slab = slab.at[_R_BIAS + 4, 0:16].set(p["p0_b"].reshape(-1))
    return {"slab": slab}


# --------------------------- pure-JAX reference -------------------------------
def cond_encoder_reference(X, enthalpy, eps, p):
    x = jnp.take(p["embed"], X, axis=0).reshape(X.shape[0], -1)
    h = jnp.maximum(x @ p["fc0_w"] + p["fc0_b"], 0.0)
    h = jnp.maximum(h @ p["fc1_w"] + p["fc1_b"], 0.0)
    mu_x = h @ p["mu_w"] + p["mu_b"]
    lv_x = h @ p["lv_w"] + p["lv_b"]
    c = enthalpy[:, None]
    hp = jnp.maximum(c @ p["p0_w"] + p["p0_b"], 0.0)
    hp = jnp.maximum(hp @ p["p1_w"] + p["p1_b"], 0.0)
    hp = hp @ p["p2_w"] + p["p2_b"]
    mu_p = hp @ p["pmu_w"] + p["pmu_b"]
    lv_p = hp @ p["plv_w"] + p["plv_b"]
    mu = 0.6 * mu_x + 0.4 * mu_p
    lv = 0.6 * lv_x + 0.4 * lv_p
    z = eps * jnp.exp(0.5 * lv) + mu
    return z, mu, lv


# --------------------------------- main ---------------------------------------
if __name__ == "__main__":
    key = jax.random.PRNGKey(0)
    k_param, k_x, k_c, k_eps = jax.random.split(key, 4)

    params = init_params(k_param)
    packed = pack_params(params)

    X = jax.random.randint(k_x, (BATCH, MAX_LENGTH), 0, NUM_VOCABS, dtype=jnp.int32)
    enthalpy = jax.random.normal(k_c, (BATCH,), jnp.float32)
    # TODO(synk): torch.randn_like noise drawn inside reparameterize is generated
    # here on the host instead (keeps the kernel deterministic given its inputs).
    eps = jax.random.normal(k_eps, (BATCH, LATENT_DIM), jnp.float32)

    z, mu, logvar = cond_encoder_forward(X, enthalpy, eps, packed)
    jax.block_until_ready((z, mu, logvar))

    assert z.shape == (BATCH, LATENT_DIM)
    assert mu.shape == (BATCH, LATENT_DIM)
    assert logvar.shape == (BATCH, LATENT_DIM)

    z_r, mu_r, lv_r = cond_encoder_reference(X, enthalpy, eps, params)
    assert bool(jnp.allclose(z, z_r, atol=1e-3, rtol=1e-3))
    assert bool(jnp.allclose(mu, mu_r, atol=1e-3, rtol=1e-3))
    assert bool(jnp.allclose(logvar, lv_r, atol=1e-3, rtol=1e-3))

    print("KERNEL_OK")
</pallas_src>

<mosaic_0001>
module attributes {stable_mosaic.version = 11 : i64} {
  func.func @cond_encoder_kernel(%arg0: i32, %arg1: memref<8x32xf32, #tpu.memory_space<vmem>>, %arg2: memref<296x64xf32, #tpu.memory_space<vmem>>, %arg3: memref<8x48xf32, #tpu.memory_space<vmem>>) attributes {dimension_semantics = [#tpu.dimension_semantics<parallel>], iteration_bounds = array<i64: 1>, scalar_prefetch = 0 : i64, scratch_operands = 0 : i64, tpu.core_type = #tpu.core_type<tc>, window_params = [{transform_indices = @transform_0, window_bounds = array<i64: 8, 32>}, {pipeline_mode = #tpu.pipeline_mode<synchronous>, transform_indices = @transform_1, window_bounds = array<i64: 296, 64>}, {transform_indices = @transform_2, window_bounds = array<i64: 8, 48>}]} {
    %c0 = arith.constant 0 : index
    %c0_0 = arith.constant 0 : index
    %0 = vector.load %arg1[%c0, %c0_0] : memref<8x32xf32, #tpu.memory_space<vmem>>, vector<8x32xf32>
    %1 = vector.extract_strided_slice %0 {offsets = [0, 0], sizes = [8, 8], strides = [1, 1]} : vector<8x32xf32> to vector<8x8xf32>
    %2 = vector.extract_strided_slice %0 {offsets = [0, 8], sizes = [8, 1], strides = [1, 1]} : vector<8x32xf32> to vector<8x1xf32>
    %3 = vector.extract_strided_slice %0 {offsets = [0, 16], sizes = [8, 16], strides = [1, 1]} : vector<8x32xf32> to vector<8x16xf32>
    %c288 = arith.constant 288 : index
    %c0_1 = arith.constant 0 : index
    %4 = vector.load %arg2[%c288, %c0_1] : memref<296x64xf32, #tpu.memory_space<vmem>>, vector<8x64xf32>
    %5 = tpu.iota {dimensions = array<i32: 0>} : vector<8x128xi32>
    %6 = tpu.iota {dimensions = array<i32: 1>} : vector<8x128xi32>
    %c4_i32 = arith.constant 4 : i32
    %7 = vector.broadcast %c4_i32 : i32 to vector<8x128xi32>
    %8 = arith.shrsi %6, %7 : vector<8x128xi32>
    %9 = arith.cmpi eq, %5, %8 : vector<8x128xi32>
    %10 = arith.extui %9 : vector<8x128xi1> to vector<8x128xi32>
    %11 = arith.sitofp %10 : vector<8x128xi32> to vector<8x128xf32>
    %12 = tpu.iota {dimensions = array<i32: 1>} : vector<8x128xi32>
    %c15_i32 = arith.constant 15 : i32
    %13 = vector.broadcast %c15_i32 : i32 to vector<8x128xi32>
    %14 = arith.andi %12, %13 : vector<8x128xi32>
    %15 = arith.sitofp %14 : vector<8x128xi32> to vector<8x128xf32>
    %cst = arith.constant dense<0.000000e+00> : vector<8x128xf32>
    %16 = tpu.matmul %1, %11, %cst {dimension_numbers = #tpu.dot_dimension_numbers<[1], [0], [0], [1], [0, 0, 1, 1], [], []>} : vector<8x8xf32>, vector<8x128xf32>, vector<8x128xf32> -> vector<8x128xf32>
    %17 = arith.cmpf oeq, %16, %15 : vector<8x128xf32>
    %18 = arith.extui %17 : vector<8x128xi1> to vector<8x128xi32>
    %19 = arith.sitofp %18 : vector<8x128xi32> to vector<8x128xf32>
    %c0_2 = arith.constant 0 : index
    %c0_3 = arith.constant 0 : index
    %20 = vector.load %arg2[%c0_2, %c0_3] : memref<296x64xf32, #tpu.memory_space<vmem>>, vector<128x64xf32>
    %cst_4 = arith.constant dense<0.000000e+00> : vector<8x64xf32>
    %21 = tpu.matmul %19, %20, %cst_4 {dimension_numbers = #tpu.dot_dimension_numbers<[1], [0], [0], [1], [0, 0, 1, 1], [], []>} : vector<8x128xf32>, vector<128x64xf32>, vector<8x64xf32> -> vector<8x64xf32>
    %22 = vector.extract_strided_slice %4 {offsets = [0, 0], sizes = [1, 64], strides = [1, 1]} : vector<8x64xf32> to vector<1x64xf32>
    %23 = vector.broadcast %22 : vector<1x64xf32> to vector<8x64xf32>
    %24 = arith.addf %21, %23 : vector<8x64xf32>
    %cst_5 = arith.constant 0.000000e+00 : f32
    %25 = vector.broadcast %cst_5 : f32 to vector<8x64xf32>
    %26 = arith.maximumf %24, %25 : vector<8x64xf32>
    %27 = vector.extract_strided_slice %4 {offsets = [3, 0], sizes = [1, 32], strides = [1, 1]} : vector<8x64xf32> to vector<1x32xf32>
    %28 = vector.broadcast %2 : vector<8x1xf32> to vector<8x32xf32>
    %29 = vector.broadcast %27 : vector<1x32xf32> to vector<8x32xf32>
    %30 = arith.mulf %28, %29 : vector<8x32xf32>
    %31 = vector.extract_strided_slice %4 {offsets = [4, 0], sizes = [1, 32], strides = [1, 1]} : vector<8x64xf32> to vector<1x32xf32>
    %32 = vector.broadcast %31 : vector<1x32xf32> to vector<8x32xf32>
    %33 = arith.addf %30, %32 : vector<8x32xf32>
    %cst_6 = arith.constant 0.000000e+00 : f32
    %34 = vector.broadcast %cst_6 : f32 to vector<8x32xf32>
    %35 = arith.maximumf %33, %34 : vector<8x32xf32>
    %36 = tpu.concatenate %26, %35 in 1 : vector<8x64xf32>, vector<8x32xf32> -> vector<8x96xf32>
    %c128 = arith.constant 128 : index
    %c0_7 = arith.constant 0 : index
    %37 = vector.load %arg2[%c128, %c0_7] : memref<296x64xf32, #tpu.memory_space<vmem>>, vector<96x64xf32>
    %cst_8 = arith.constant dense<0.000000e+00> : vector<8x64xf32>
    %38 = tpu.matmul %36, %37, %cst_8 {dimension_numbers = #tpu.dot_dimension_numbers<[1], [0], [0], [1], [0, 0, 1, 1], [], []>} : vector<8x96xf32>, vector<96x64xf32>, vector<8x64xf32> -> vector<8x64xf32>
    %39 = vector.extract_strided_slice %4 {offsets = [1, 0], sizes = [1, 64], strides = [1, 1]} : vector<8x64xf32> to vector<1x64xf32>
    %40 = vector.broadcast %39 : vector<1x64xf32> to vector<8x64xf32>
    %41 = arith.addf %38, %40 : vector<8x64xf32>
    %cst_9 = arith.constant 0.000000e+00 : f32
    %42 = vector.broadcast %cst_9 : f32 to vector<8x64xf32>
    %43 = arith.maximumf %41, %42 : vector<8x64xf32>
    %c224 = arith.constant 224 : index
    %c0_10 = arith.constant 0 : index
    %44 = vector.load %arg2[%c224, %c0_10] : memref<296x64xf32, #tpu.memory_space<vmem>>, vector<64x32xf32>
    %cst_11 = arith.constant dense<0.000000e+00> : vector<8x32xf32>
    %45 = tpu.matmul %43, %44, %cst_11 {dimension_numbers = #tpu.dot_dimension_numbers<[1], [0], [0], [1], [0, 0, 1, 1], [], []>} : vector<8x64xf32>, vector<64x32xf32>, vector<8x32xf32> -> vector<8x32xf32>
    %46 = vector.extract_strided_slice %4 {offsets = [2, 0], sizes = [1, 32], strides = [1, 1]} : vector<8x64xf32> to vector<1x32xf32>
    %47 = vector.broadcast %46 : vector<1x32xf32> to vector<8x32xf32>
    %48 = arith.addf %45, %47 : vector<8x32xf32>
    %49 = vector.extract_strided_slice %48 {offsets = [0, 0], sizes = [8, 16], strides = [1, 1]} : vector<8x32xf32> to vector<8x16xf32>
    %50 = vector.extract_strided_slice %48 {offsets = [0, 16], sizes = [8, 16], strides = [1, 1]} : vector<8x32xf32> to vector<8x16xf32>
    %cst_12 = arith.constant 5.000000e-01 : f32
    %51 = vector.broadcast %cst_12 : f32 to vector<8x16xf32>
    %52 = arith.mulf %51, %50 : vector<8x16xf32>
    %53 = math.exp %52 : vector<8x16xf32>
    %54 = arith.mulf %3, %53 : vector<8x16xf32>
    %55 = arith.addf %54, %49 : vector<8x16xf32>
    %c0_13 = arith.constant 0 : index
    %c0_14 = arith.constant 0 : index
    %56 = vector.load %arg3[%c0_13, %c0_14] : memref<8x48xf32, #tpu.memory_space<vmem>>, vector<8x16xf32>
    tpu.vector_store %arg3[%c0_13, %c0_14], %55 {strides = array<i32>} : memref<8x48xf32, #tpu.memory_space<vmem>>, vector<8x16xf32>,
    %c0_15 = arith.constant 0 : index
    %c16 = arith.constant 16 : index
    %57 = vector.load %arg3[%c0_15, %c16] : memref<8x48xf32, #tpu.memory_space<vmem>>, vector<8x32xf32>
    tpu.vector_store %arg3[%c0_15, %c16], %48 {strides = array<i32>} : memref<8x48xf32, #tpu.memory_space<vmem>>, vector<8x32xf32>,
    return
  }
  func.func @transform_0(%arg0: i32) -> (i32, i32) {
    %c0_i32 = arith.constant 0 : i32
    %c0_i32_0 = arith.constant 0 : i32
    return %arg0, %c0_i32 : i32, i32
  }
  func.func @transform_1(%arg0: i32) -> (i32, i32) {
    %c0_i32 = arith.constant 0 : i32
    %c0_i32_0 = arith.constant 0 : i32
    %c0_i32_1 = arith.constant 0 : i32
    return %c0_i32, %c0_i32_0 : i32, i32
  }
  func.func @transform_2(%arg0: i32) -> (i32, i32) {
    %c0_i32 = arith.constant 0 : i32
    %c0_i32_0 = arith.constant 0 : i32
    return %arg0, %c0_i32 : i32, i32
  }
}

</mosaic_0001>

<llo_original>
// kernel: cond_encoder_forward.1
$region0: #{cond_encoder_forward.1}
  #allocation0 [shape = 'u32[]', space=smem, size = 0x4, offset = 0x4, fixed_abs, tag = 'smem constant byte address 0x4 - core index']
  #allocation1 [shape = 'u32[72,128]{1,0:T(1,128)}', space=vmem, size = 0x9000, scoped, tag = 'internal scratch']
  %s0 = inlined_call_operand.vmem [shape: f32[2,32], index: 0, kind: input, shape index: {}]
  %s1 = inlined_call_operand.vmem [shape: f32[296,64], index: 1, kind: input, shape index: {}]
  %s2 = inlined_call_operand.vmem [shape: f32[2,48], index: 2, kind: output, shape index: {}]
  %s3 = sld [smem:[#allocation0]]
  $region48: #{cond_encoder_forward.1} parent=0
    _
  %s5 = ssub.s32 1, %s3
  %s6 = scalar_select 0, %s5, %s3
  $region1: #{cond_encoder_forward.1} parent=0
    #allocation2 [shape = 'u8[4096]{0}', space=vmem, size = 0x1000, scoped, tag = 'output window, operand 0, single buffered']
    // Predicated region
    $region2: #{cond_encoder_forward.1} parent=1 // pred_check
      _
    $region3: #{cond_encoder_forward.1} parent=1 // pred_check_branch
      %8 = sbr.rel (0) target = $region5
    $region4: #{cond_encoder_forward.1} parent=1 // pred_region
      _
    $region5: #{cond_encoder_forward.1} parent=1 // pred_fallthru
      _
    // Predicated region
    $region6: #{cond_encoder_forward.1} parent=1 // pred_check
      _
    $region7: #{cond_encoder_forward.1} parent=1 // pred_check_branch
      %10 = sbr.rel (0) target = $region9
    $region8: #{cond_encoder_forward.1} parent=1 // pred_region
      _
    $region9: #{cond_encoder_forward.1} parent=1 // pred_fallthru
      _
    %v11 = vld [vmem:[%s0] sm:$0xff]
    %v12 = vld [vmem:[%s1 + $0x120] sm:$0xff]
    %v13 = vlaneseq
    %v14 = vshrl.u32 %v13, 7
    %v15 = vlaneseq
    %v16 = vand.u32 %v15, 127
    %v17 = vshra.s32 %v16, 4
    %vm18 = vcmp.eq.s32.totalorder %v14, %v17
    %v19 = vsel %vm18, 1, 0
    %v20 = vcvt.s32.f32 %v19
    %v21 = vand.u32 %v16, 15
    %v22 = vcvt.s32.f32 %v21
    %vm23 = vcmask 64512
    %v25 = vsel %vm23, %v11, 0
    %27 = vmatpush.msra.mxu0 0.0
    %28 = vmatpush.msra.mxu0 0.0
    %29 = vmatpush.msra.mxu0 0.0
    %30 = vmatpush.msra.mxu0 0.0
    %31 = vmatpush.msra.mxu0 0.0
    %32 = vmatpush.msra.mxu0 0.0
    %33 = vmatpush.msra.mxu0 0.0
    %34 = vmatpush.msra.mxu0 0.0
    %35 = vmatpush.msra.mxu0 0.0
    %36 = vmatpush.msra.mxu0 0.0
    %37 = vmatpush.msra.mxu0 0.0
    %38 = vmatpush.msra.mxu0 0.0
    %39 = vmatpush.msra.mxu0 0.0
    %40 = vmatpush.msra.mxu0 0.0
    %41 = vmatpush.msra.mxu0 0.0
    %42 = vmatpush.msra.mxu0 %v20
    %43 = vmatmul.f32.gmra.mxu0 %v25
    %v44 = vpop.f32.mrf.mxu0
    %v45 = vadd.f32 0.0, %v44
    %46 = vdwg.mxu0
    %vm47 = vcmp.eq.f32.partialorder %v45, %v22
    %v48 = vsel %vm47, 1, 0
    %v49 = vcvt.s32.f32 %v48
    %v50 = vld [vmem:[%s1] sm:$0xff]
    %v51 = vld [vmem:[%s1 + $0x8] sm:$0xff]
    %v52 = vld [vmem:[%s1 + $0x10] sm:$0xff]
    %v53 = vld [vmem:[%s1 + $0x18] sm:$0xff]
    %v54 = vld [vmem:[%s1 + $0x20] sm:$0xff]
    %v55 = vld [vmem:[%s1 + $0x28] sm:$0xff]
    %v56 = vld [vmem:[%s1 + $0x30] sm:$0xff]
    %v57 = vld [vmem:[%s1 + $0x38] sm:$0xff]
    %v58 = vld [vmem:[%s1 + $0x40] sm:$0xff]
    %v59 = vld [vmem:[%s1 + $0x48] sm:$0xff]
    %v60 = vld [vmem:[%s1 + $0x50] sm:$0xff]
    %v61 = vld [vmem:[%s1 + $0x58] sm:$0xff]
    %v62 = vld [vmem:[%s1 + $0x60] sm:$0xff]
    %v63 = vld [vmem:[%s1 + $0x68] sm:$0xff]
    %v64 = vld [vmem:[%s1 + $0x70] sm:$0xff]
    %v65 = vld [vmem:[%s1 + $0x78] sm:$0xff]
    %v66 = vperm.slane %v12, 0
    %67 = vmatpush.msra.mxu0 %v65
    %68 = vmatpush.msra.mxu0 %v64
    %69 = vmatpush.msra.mxu0 %v63
    %70 = vmatpush.msra.mxu0 %v62
    %71 = vmatpush.msra.mxu0 %v61
    %72 = vmatpush.msra.mxu0 %v60
    %73 = vmatpush.msra.mxu0 %v59
    %74 = vmatpush.msra.mxu0 %v58
    %75 = vmatpush.msra.mxu0 %v57
    %76 = vmatpush.msra.mxu0 %v56
    %77 = vmatpush.msra.mxu0 %v55
    %78 = vmatpush.msra.mxu0 %v54
    %79 = vmatpush.msra.mxu0 %v53
    %80 = vmatpush.msra.mxu0 %v52
    %81 = vmatpush.msra.mxu0 %v51
    %82 = vmatpush.msra.mxu0 %v50
    %83 = vmatmul.f32.gmra.mxu0 %v49
    %v84 = vpop.f32.mrf.mxu0
    %v85 = vadd.f32 %v66, %v84
    %86 = vdwg.mxu0
    %v87 = vmax.f32 %v85, 0.0
    %88 = vset.pattern.permute.xlu0 8
    %89 = vperm.xlu0 %88, %v11
    %v90 = vpop.permute.xlu0 %89
    %v92 = vperm.slane %v12, 3
    %v93 = vmul.f32 %v90, %v92
    %v94 = vperm.slane %v12, 4
    %v95 = vadd.f32 %v93, %v94
    %v96 = vmax.f32 %v95, 0.0
    %98 = vrot.lane.b32.xlu0 %v96, 64
    %v99 = vpop.permute.xlu0 %98
    %vm101 = vcmask 523264
    %v102 = vsel %vm101, %v87, %v99
    %v103 = vld [vmem:[%s1 + $0x80] sm:$0xff]
    %v104 = vld [vmem:[%s1 + $0x88] sm:$0xff]
    %v105 = vld [vmem:[%s1 + $0x90] sm:$0xff]
    %v106 = vld [vmem:[%s1 + $0x98] sm:$0xff]
    %v107 = vld [vmem:[%s1 + $0xa0] sm:$0xff]
    %v108 = vld [vmem:[%s1 + $0xa8] sm:$0xff]
    %v109 = vld [vmem:[%s1 + $0xb0] sm:$0xff]
    %v110 = vld [vmem:[%s1 + $0xb8] sm:$0xff]
    %v111 = vld [vmem:[%s1 + $0xc0] sm:$0xff]
    %v112 = vld [vmem:[%s1 + $0xc8] sm:$0xff]
    %v113 = vld [vmem:[%s1 + $0xd0] sm:$0xff]
    %v114 = vld [vmem:[%s1 + $0xd8] sm:$0xff]
    %v115 = vperm.slane %v12, 1
    %vm116 = vcmask 785408
    %v118 = vsel %vm116, %v102, 0
    %120 = vmatpush.msra.mxu0 0.0
    %121 = vmatpush.msra.mxu0 0.0
    %122 = vmatpush.msra.mxu0 0.0
    %123 = vmatpush.msra.mxu0 0.0
    %124 = vmatpush.msra.mxu0 %v114
    %125 = vmatpush.msra.mxu0 %v113
    %126 = vmatpush.msra.mxu0 %v112
    %127 = vmatpush.msra.mxu0 %v111
    %128 = vmatpush.msra.mxu0 %v110
    %129 = vmatpush.msra.mxu0 %v109
    %130 = vmatpush.msra.mxu0 %v108
    %131 = vmatpush.msra.mxu0 %v107
    %132 = vmatpush.msra.mxu0 %v106
    %133 = vmatpush.msra.mxu0 %v105
    %134 = vmatpush.msra.mxu0 %v104
    %135 = vmatpush.msra.mxu0 %v103
    %136 = vmatmul.f32.gmra.mxu0 %v118
    %v137 = vpop.f32.mrf.mxu0
    %v138 = vadd.f32 %v115, %v137
    %139 = vdwg.mxu0
    %v140 = vmax.f32 %v138, 0.0
    %v141 = vld [vmem:[%s1 + $0xe0] sm:$0xff]
    %v142 = vld [vmem:[%s1 + $0xe8] sm:$0xff]
    %v143 = vld [vmem:[%s1 + $0xf0] sm:$0xff]
    %v144 = vld [vmem:[%s1 + $0xf8] sm:$0xff]
    %v145 = vld [vmem:[%s1 + $0x100] sm:$0xff]
    %v146 = vld [vmem:[%s1 + $0x108] sm:$0xff]
    %v147 = vld [vmem:[%s1 + $0x110] sm:$0xff]
    %v148 = vld [vmem:[%s1 + $0x118] sm:$0xff]
    %v149 = vperm.slane %v12, 2
    %v151 = vsel %vm101, %v140, 0
    %153 = vmatpush.msra.mxu0 0.0
    %154 = vmatpush.msra.mxu0 0.0
    %155 = vmatpush.msra.mxu0 0.0
    %156 = vmatpush.msra.mxu0 0.0
    %157 = vmatpush.msra.mxu0 0.0
    %158 = vmatpush.msra.mxu0 0.0
    %159 = vmatpush.msra.mxu0 0.0
    %160 = vmatpush.msra.mxu0 0.0
    %161 = vmatpush.msra.mxu0 %v148
    %162 = vmatpush.msra.mxu0 %v147
    %163 = vmatpush.msra.mxu0 %v146
    %164 = vmatpush.msra.mxu0 %v145
    %165 = vmatpush.msra.mxu0 %v144
    %166 = vmatpush.msra.mxu0 %v143
    %167 = vmatpush.msra.mxu0 %v142
    %168 = vmatpush.msra.mxu0 %v141
    %169 = vmatmul.f32.gmra.mxu0 %v151
    %v170 = vpop.f32.mrf.mxu0
    %v171 = vadd.f32 %v149, %v170
    %172 = vdwg.mxu0
    %v173 = vmul.f32 %v171, 0.5
    %v174 = vmul.f32 %v173, 1.442695
    %v175 = vpow.pop %v174
    %v176 = vmul.f32 %v11, %v175
    %178 = vrot.lane.b32.xlu0 %v171, 16
    %v179 = vpop.permute.xlu0 %178
    %v181 = vadd.f32 %v176, %v179
    %183 = vrot.lane.b32.xlu0 %v181, 112
    %v184 = vpop.permute.xlu0 %183
    %vm186 = vcmask 130048
    %187 = vst.msk [vmem:[#allocation2] sm:$0xff] %vm186, %v184
    %vm188 = vcmask 392320
    %189 = vst.msk [vmem:[#allocation2] sm:$0xff] %vm188, %v179
    // Predicated region
    $region10: #{cond_encoder_forward.1} parent=1 // pred_check
      _
    $region11: #{cond_encoder_forward.1} parent=1 // pred_check_branch
      %191 = sbr.rel (0) target = $region13
    $region12: #{cond_encoder_forward.1} parent=1 // pred_region
      // Predicated region
      $region14: #{cond_encoder_forward.1} parent=12 // pred_check
        _
      $region15: #{cond_encoder_forward.1} parent=12 // pred_check_branch
        %193 = sbr.rel (0) target = $region17
      $region16: #{cond_encoder_forward.1} parent=12 // pred_region
        // Predicated region
        $region18: #{cond_encoder_forward.1} parent=16 // pred_check
          _
        $region19: #{cond_encoder_forward.1} parent=16 // pred_check_branch
          %195 = sbr.rel target = $region21
        $region20: #{cond_encoder_forward.1} parent=16 // pred_region
          // Predicated region
          $region33: #{cond_encoder_forward.1} parent=20 // pred_check
            _
          $region34: #{cond_encoder_forward.1} parent=20 // pred_check_branch
            %211 = sbr.rel (0) target = $region36
          $region35: #{cond_encoder_forward.1} parent=20 // pred_region
            %s213 = ssub.s32 4, 1
            loop: start=0, step=1, limit=1
            $region37: #{cond_encoder_forward.1} parent=35 // loop_pre_header
              _
            $region38: #{cond_encoder_forward.1} parent=35 // loop_header
              %s215 = sphi 0, %s219
              %p216 = scmp.ge.s32.totalorder %s215, 1
              %s220 = sphi [#allocation2], [#allocation2]
              %s221 = sphi %s2, %s2
            $region39: #{cond_encoder_forward.1} parent=35 // loop_header_branch
              %218 = sbr.rel (%p216) target = $region43
            $region40: #{cond_encoder_forward.1} parent=35 // loop_body
              %v222 = vld [vmem:[%s220] sm:%s213]
              %223 = vst [vmem:[%s221] sm:%s213] %v222
            $region41: #{cond_encoder_forward.1} parent=35 // loop_footer
              %s219 = sadd.s32 1, %s215
            $region42: #{cond_encoder_forward.1} parent=35 // loop_footer_branch
              %214 = sbr.rel target = $region38
            $region43: #{cond_encoder_forward.1} parent=35 // loop_exit
              _
          $region36: #{cond_encoder_forward.1} parent=20 // pred_fallthru
            _
        $region21: #{cond_encoder_forward.1} parent=16 // pred_fallthru
          _
        // Predicated region
        $region22: #{cond_encoder_forward.1} parent=16 // pred_check
          _
        $region23: #{cond_encoder_forward.1} parent=16 // pred_check_branch
          %197 = sbr.rel (0) target = $region25
        $region24: #{cond_encoder_forward.1} parent=16 // pred_region
          %s199 = ssub.s32 4, 1
          loop: start=0, step=1, limit=1
          $region26: #{cond_encoder_forward.1} parent=24 // loop_pre_header
            _
          $region27: #{cond_encoder_forward.1} parent=24 // loop_header
            %s201 = sphi 0, %s205
            %p202 = scmp.ge.s32.totalorder %s201, 1
            %s206 = sphi [#allocation2], [#allocation2]
            %s207 = sphi %s2, %s2
          $region28: #{cond_encoder_forward.1} parent=24 // loop_header_branch
            %204 = sbr.rel (%p202) target = $region32
          $region29: #{cond_encoder_forward.1} parent=24 // loop_body
            %v208 = vld [vmem:[%s206] sm:%s199]
            %209 = vst [vmem:[%s207] sm:%s199] %v208
          $region30: #{cond_encoder_forward.1} parent=24 // loop_footer
            %s205 = sadd.s32 1, %s201
          $region31: #{cond_encoder_forward.1} parent=24 // loop_footer_branch
            %200 = sbr.rel target = $region27
          $region32: #{cond_encoder_forward.1} parent=24 // loop_exit
            _
        $region25: #{cond_encoder_forward.1} parent=16 // pred_fallthru
          _
      $region17: #{cond_encoder_forward.1} parent=12 // pred_fallthru
        _
      %224 = vnop
    $region13: #{cond_encoder_forward.1} parent=1 // pred_fallthru
      _
    // Predicated region
    $region44: #{cond_encoder_forward.1} parent=1 // pred_check
      _
    $region45: #{cond_encoder_forward.1} parent=1 // pred_check_branch
      %226 = sbr.rel (0) target = $region47
    $region46: #{cond_encoder_forward.1} parent=1 // pred_region
      _
    $region47: #{cond_encoder_forward.1} parent=1 // pred_fallthru
      _

</llo_original>
